<compile_context>
chip_gen: v7x
topology: tpu7x:2x2x1
jax: 0.10.0
libtpu: 0.0.40
codegen_flags: <defaults>
</compile_context>

<pallas_src>
import functools

import jax
import jax.numpy as jnp
from jax.experimental import pallas as pl
from jax.experimental.pallas import tpu as pltpu


def _merger_kernel(x_ref, w1_ref, b1_ref, w2_ref, b2_ref, out_ref, *, split_idx):
    # Static ref slices along the feature axis — zero-cost views of the x tile.
    x1 = x_ref[:, :split_idx]
    x2 = x_ref[:, split_idx:]

    # module_1: Linear on the first split  -> left half of the output.
    y1 = jnp.dot(x1, w1_ref[...], preferred_element_type=jnp.float32)
    y1 = y1 + b1_ref[...]                      # b1 is (1, H1), broadcasts over batch
    # module_2: Linear on the second split -> right half of the output.
    y2 = jnp.dot(x2, w2_ref[...], preferred_element_type=jnp.float32)
    y2 = y2 + b2_ref[...]

    # torch.cat([y1, y2], dim=1): build the concatenated tile in registers and
    # do a single full-width store (lane-dense vst, no masked partial stores).
    out_ref[...] = jnp.concatenate([y1, y2], axis=-1).astype(out_ref.dtype)


def module_merger_forward(x, split_idx, w1, b1, w2, b2, *, batch_tile=256):
    """x: [B, D]; splits at `split_idx` along dim 1, applies the two Linear
    sub-modules and concatenates their outputs along dim 1."""
    B, D = x.shape
    K1 = split_idx
    K2 = D - split_idx
    assert w1.shape[0] == K1 and w2.shape[0] == K2
    H1 = w1.shape[1]
    H2 = w2.shape[1]

    # Biases as (1, H) tiles so they broadcast over the batch inside the kernel.
    b1_2d = b1.reshape(1, H1)
    b2_2d = b2.reshape(1, H2)

    # Batch tiling: largest tile that keeps x/out blocks comfortably in VMEM
    # while letting the grid pipeline over the batch (weights stay resident).
    tm = min(B, batch_tile)
    grid_b = pl.cdiv(B, tm)

    kernel = functools.partial(_merger_kernel, split_idx=split_idx)

    out = pl.pallas_call(
        kernel,
        out_shape=jax.ShapeDtypeStruct((B, H1 + H2), x.dtype),
        grid_spec=pltpu.PrefetchScalarGridSpec(
            num_scalar_prefetch=0,
            grid=(grid_b,),
            in_specs=[
                # x tile walks the batch axis; full feature width each step.
                pl.BlockSpec((tm, D), lambda i: (i, 0)),
                # Weights / biases: constant block index -> resident in VMEM.
                pl.BlockSpec((K1, H1), lambda i: (0, 0)),
                pl.BlockSpec((1, H1), lambda i: (0, 0)),
                pl.BlockSpec((K2, H2), lambda i: (0, 0)),
                pl.BlockSpec((1, H2), lambda i: (0, 0)),
            ],
            out_specs=pl.BlockSpec((tm, H1 + H2), lambda i: (i, 0)),
        ),
        compiler_params=pltpu.CompilerParams(
            # Batch axis is independent -> shard across TensorCores on v7x.
            dimension_semantics=("parallel",),
        ),
    )(x, w1, b1_2d, w2, b2_2d)
    return out


def _reference(x, split_idx, w1, b1, w2, b2):
    x1 = x[:, :split_idx]
    x2 = x[:, split_idx:]
    y1 = x1 @ w1 + b1
    y2 = x2 @ w2 + b2
    return jnp.concatenate([y1, y2], axis=1)


if __name__ == "__main__":
    key = jax.random.PRNGKey(0)
    B = 8           # batch
    D = 32          # total input features
    split_idx = 16  # split point along dim 1
    H1 = 32         # out features of module_1
    H2 = 32         # out features of module_2

    kx, k1, k2, k3, k4 = jax.random.split(key, 5)
    x = jax.random.normal(kx, (B, D), dtype=jnp.float32)
    # Deterministic parameter init (module_1 / module_2 = Linear layers).
    w1 = jax.random.normal(k1, (split_idx, H1), dtype=jnp.float32) * 0.1
    b1 = jax.random.normal(k2, (H1,), dtype=jnp.float32) * 0.1
    w2 = jax.random.normal(k3, (D - split_idx, H2), dtype=jnp.float32) * 0.1
    b2 = jax.random.normal(k4, (H2,), dtype=jnp.float32) * 0.1

    out = module_merger_forward(x, split_idx, w1, b1, w2, b2)
    out = jax.block_until_ready(out)

    ref = _reference(x, split_idx, w1, b1, w2, b2)
    assert out.shape == (B, H1 + H2), out.shape
    assert out.dtype == x.dtype, out.dtype
    assert jnp.allclose(out, ref, atol=1e-4, rtol=1e-4), "mismatch vs reference"

    print("KERNEL_OK")
</pallas_src>

<mosaic_0001>
module attributes {stable_mosaic.version = 11 : i64} {
  func.func @_merger_kernel(%arg0: i32, %arg1: memref<8x32xf32, #tpu.memory_space<vmem>>, %arg2: memref<16x32xf32, #tpu.memory_space<vmem>>, %arg3: memref<1x32xf32, #tpu.memory_space<vmem>>, %arg4: memref<16x32xf32, #tpu.memory_space<vmem>>, %arg5: memref<1x32xf32, #tpu.memory_space<vmem>>, %arg6: memref<8x64xf32, #tpu.memory_space<vmem>>) attributes {dimension_semantics = [#tpu.dimension_semantics<parallel>], iteration_bounds = array<i64: 1>, scalar_prefetch = 0 : i64, scratch_operands = 0 : i64, tpu.core_type = #tpu.core_type<tc>, window_params = [{transform_indices = @transform_0, window_bounds = array<i64: 8, 32>}, {pipeline_mode = #tpu.pipeline_mode<synchronous>, transform_indices = @transform_1, window_bounds = array<i64: 16, 32>}, {pipeline_mode = #tpu.pipeline_mode<synchronous>, transform_indices = @transform_2, window_bounds = array<i64: 1, 32>}, {pipeline_mode = #tpu.pipeline_mode<synchronous>, transform_indices = @transform_3, window_bounds = array<i64: 16, 32>}, {pipeline_mode = #tpu.pipeline_mode<synchronous>, transform_indices = @transform_4, window_bounds = array<i64: 1, 32>}, {transform_indices = @transform_5, window_bounds = array<i64: 8, 64>}]} {
    %c0 = arith.constant 0 : index
    %c0_0 = arith.constant 0 : index
    %0 = vector.load %arg1[%c0, %c0_0] : memref<8x32xf32, #tpu.memory_space<vmem>>, vector<8x16xf32>
    %c0_1 = arith.constant 0 : index
    %c16 = arith.constant 16 : index
    %1 = vector.load %arg1[%c0_1, %c16] : memref<8x32xf32, #tpu.memory_space<vmem>>, vector<8x16xf32>
    %c0_2 = arith.constant 0 : index
    %c0_3 = arith.constant 0 : index
    %2 = vector.load %arg2[%c0_2, %c0_3] : memref<16x32xf32, #tpu.memory_space<vmem>>, vector<16x32xf32>
    %cst = arith.constant dense<0.000000e+00> : vector<8x32xf32>
    %3 = tpu.matmul %0, %2, %cst {dimension_numbers = #tpu.dot_dimension_numbers<[1], [0], [0], [1], [0, 0, 1, 1], [], []>} : vector<8x16xf32>, vector<16x32xf32>, vector<8x32xf32> -> vector<8x32xf32>
    %c0_4 = arith.constant 0 : index
    %c0_5 = arith.constant 0 : index
    %4 = vector.load %arg3[%c0_4, %c0_5] : memref<1x32xf32, #tpu.memory_space<vmem>>, vector<1x32xf32>
    %5 = vector.broadcast %4 : vector<1x32xf32> to vector<8x32xf32>
    %6 = arith.addf %3, %5 : vector<8x32xf32>
    %c0_6 = arith.constant 0 : index
    %c0_7 = arith.constant 0 : index
    %7 = vector.load %arg4[%c0_6, %c0_7] : memref<16x32xf32, #tpu.memory_space<vmem>>, vector<16x32xf32>
    %cst_8 = arith.constant dense<0.000000e+00> : vector<8x32xf32>
    %8 = tpu.matmul %1, %7, %cst_8 {dimension_numbers = #tpu.dot_dimension_numbers<[1], [0], [0], [1], [0, 0, 1, 1], [], []>} : vector<8x16xf32>, vector<16x32xf32>, vector<8x32xf32> -> vector<8x32xf32>
    %c0_9 = arith.constant 0 : index
    %c0_10 = arith.constant 0 : index
    %9 = vector.load %arg5[%c0_9, %c0_10] : memref<1x32xf32, #tpu.memory_space<vmem>>, vector<1x32xf32>
    %10 = vector.broadcast %9 : vector<1x32xf32> to vector<8x32xf32>
    %11 = arith.addf %8, %10 : vector<8x32xf32>
    %12 = tpu.concatenate %6, %11 in 1 : vector<8x32xf32>, vector<8x32xf32> -> vector<8x64xf32>
    %c0_11 = arith.constant 0 : index
    %c0_12 = arith.constant 0 : index
    %13 = vector.load %arg6[%c0_11, %c0_12] : memref<8x64xf32, #tpu.memory_space<vmem>>, vector<8x64xf32>
    tpu.vector_store %arg6[%c0_11, %c0_12], %12 {strides = array<i32>} : memref<8x64xf32, #tpu.memory_space<vmem>>, vector<8x64xf32>,
    return
  }
  func.func @transform_0(%arg0: i32) -> (i32, i32) {
    %c0_i32 = arith.constant 0 : i32
    %c0_i32_0 = arith.constant 0 : i32
    return %arg0, %c0_i32 : i32, i32
  }
  func.func @transform_1(%arg0: i32) -> (i32, i32) {
    %c0_i32 = arith.constant 0 : i32
    %c0_i32_0 = arith.constant 0 : i32
    %c0_i32_1 = arith.constant 0 : i32
    return %c0_i32, %c0_i32_0 : i32, i32
  }
  func.func @transform_2(%arg0: i32) -> (i32, i32) {
    %c0_i32 = arith.constant 0 : i32
    %c0_i32_0 = arith.constant 0 : i32
    %c0_i32_1 = arith.constant 0 : i32
    return %c0_i32, %c0_i32_0 : i32, i32
  }
  func.func @transform_3(%arg0: i32) -> (i32, i32) {
    %c0_i32 = arith.constant 0 : i32
    %c0_i32_0 = arith.constant 0 : i32
    %c0_i32_1 = arith.constant 0 : i32
    return %c0_i32, %c0_i32_0 : i32, i32
  }
  func.func @transform_4(%arg0: i32) -> (i32, i32) {
    %c0_i32 = arith.constant 0 : i32
    %c0_i32_0 = arith.constant 0 : i32
    %c0_i32_1 = arith.constant 0 : i32
    return %c0_i32, %c0_i32_0 : i32, i32
  }
  func.func @transform_5(%arg0: i32) -> (i32, i32) {
    %c0_i32 = arith.constant 0 : i32
    %c0_i32_0 = arith.constant 0 : i32
    return %arg0, %c0_i32 : i32, i32
  }
}

</mosaic_0001>

<llo_original>
// kernel: tpu_custom_call.1
$region0: #{tpu_custom_call.1}
  #allocation0 [shape = 'u32[]', space=smem, size = 0x4, offset = 0x4, fixed_abs, tag = 'smem constant byte address 0x4 - core index']
  #allocation1 [shape = 'u32[144,128]{1,0:T(1,128)}', space=vmem, size = 0x12000, scoped, tag = 'internal scratch']
  %s0 = inlined_call_operand.hbm [shape: f32[8,32], index: 0, kind: input, shape index: {}]
  %s1 = inlined_call_operand.hbm [shape: f32[16,32], index: 1, kind: input, shape index: {}]
  %s2 = inlined_call_operand.vmem [shape: f32[1,32], index: 2, kind: input, shape index: {}]
  %s3 = inlined_call_operand.hbm [shape: f32[16,32], index: 3, kind: input, shape index: {}]
  %s4 = inlined_call_operand.vmem [shape: f32[1,32], index: 4, kind: input, shape index: {}]
  %s5 = inlined_call_operand.hbm [shape: f32[8,64], index: 5, kind: output, shape index: {}]
  %s6 = sld [smem:[#allocation0]]
  $region42: #{tpu_custom_call.1} parent=0
    _
  %s8 = ssub.s32 1, %s6
  %s9 = scalar_select 0, %s8, %s6
  $region1: #{tpu_custom_call.1} parent=0
    #allocation2 [shape = 'u8[4096]{0}', space=vmem, size = 0x1000, scoped, tag = 'input window, operand 0, single buffered']
    #allocation3 [shape = 's32[1]{0}', space=sflag, size = 0x4, scoped, tag = 'scoped memory for tpu_custom_call.1']
    #allocation4 [shape = 's32[1]{0}', space=sflag, size = 0x4, scoped, tag = 'scoped memory for tpu_custom_call.1']
    #allocation5 [shape = 'u8[8192]{0}', space=vmem, size = 0x2000, scoped, tag = 'input window, operand 1, single buffered']
    #allocation6 [shape = 's32[1]{0}', space=sflag, size = 0x4, scoped, tag = 'scoped memory for tpu_custom_call.1']
    #allocation7 [shape = 'u8[8192]{0}', space=vmem, size = 0x2000, scoped, tag = 'input window, operand 3, single buffered']
    #allocation8 [shape = 'u8[4096]{0}', space=vmem, size = 0x1000, scoped, tag = 'output window, operand 0, single buffered']
    %10 = vsyncpa [#allocation3], 0
    %11 = vsyncpa [#allocation6], 0
    %12 = vsyncpa [#allocation4], 0
    // Predicated region
    $region2: #{tpu_custom_call.1} parent=1 // pred_check
      _
    $region3: #{tpu_custom_call.1} parent=1 // pred_check_branch
      %14 = sbr.rel (0) target = $region5
    $region4: #{tpu_custom_call.1} parent=1 // pred_region
      %s16 = ssub.s32 128, 128
      %17 = vsyncadd [#allocation3], %s16
      %s19 = sshll.u32 [#allocation2], 4
      %s20 = int_to_ptr.vmem [resolvable:$true] %s19
      %22 = dma.hbm_to_vmem [thread:$0]  %s0, 128, %s20, [#allocation3]
    $region5: #{tpu_custom_call.1} parent=1 // pred_fallthru
      _
    // Predicated region
    $region6: #{tpu_custom_call.1} parent=1 // pred_check
      _
    $region7: #{tpu_custom_call.1} parent=1 // pred_check_branch
      %24 = sbr.rel (0) target = $region9
    $region8: #{tpu_custom_call.1} parent=1 // pred_region
      %s26 = ssub.s32 256, 256
      %27 = vsyncadd [#allocation6], %s26
      %s28 = sshll.u32 [#allocation5], 4
      %s29 = int_to_ptr.vmem [resolvable:$true] %s28
      %34 = dma.hbm_to_vmem [thread:$0]  %s1, 256, %s29, [#allocation6], 128, 128, 8
    $region9: #{tpu_custom_call.1} parent=1 // pred_fallthru
      _
    // Predicated region
    $region10: #{tpu_custom_call.1} parent=1 // pred_check
      _
    $region11: #{tpu_custom_call.1} parent=1 // pred_check_branch
      %36 = sbr.rel (0) target = $region13
    $region12: #{tpu_custom_call.1} parent=1 // pred_region
      _
    $region13: #{tpu_custom_call.1} parent=1 // pred_fallthru
      _
    // Predicated region
    $region14: #{tpu_custom_call.1} parent=1 // pred_check
      _
    $region15: #{tpu_custom_call.1} parent=1 // pred_check_branch
      %38 = sbr.rel (0) target = $region17
    $region16: #{tpu_custom_call.1} parent=1 // pred_region
      %s40 = ssub.s32 256, 256
      %41 = vsyncadd [#allocation6], %s40
      %s42 = sshll.u32 [#allocation7], 4
      %s43 = int_to_ptr.vmem [resolvable:$true] %s42
      %48 = dma.hbm_to_vmem [thread:$0]  %s3, 256, %s43, [#allocation6], 128, 128, 8
    $region17: #{tpu_custom_call.1} parent=1 // pred_fallthru
      _
    // Predicated region
    $region18: #{tpu_custom_call.1} parent=1 // pred_check
      _
    $region19: #{tpu_custom_call.1} parent=1 // pred_check_branch
      %50 = sbr.rel (0) target = $region21
    $region20: #{tpu_custom_call.1} parent=1 // pred_region
      _
    $region21: #{tpu_custom_call.1} parent=1 // pred_fallthru
      _
    // Predicated region
    $region22: #{tpu_custom_call.1} parent=1 // pred_check
      _
    $region23: #{tpu_custom_call.1} parent=1 // pred_check_branch
      %52 = sbr.rel (0) target = $region25
    $region24: #{tpu_custom_call.1} parent=1 // pred_region
      %53 = dma.done [#allocation3], 128
    $region25: #{tpu_custom_call.1} parent=1 // pred_fallthru
      _
    // Predicated region
    $region26: #{tpu_custom_call.1} parent=1 // pred_check
      _
    $region27: #{tpu_custom_call.1} parent=1 // pred_check_branch
      %55 = sbr.rel (0) target = $region29
    $region28: #{tpu_custom_call.1} parent=1 // pred_region
      %56 = dma.done [#allocation6], 256
    $region29: #{tpu_custom_call.1} parent=1 // pred_fallthru
      _
    // Predicated region
    $region30: #{tpu_custom_call.1} parent=1 // pred_check
      _
    $region31: #{tpu_custom_call.1} parent=1 // pred_check_branch
      %58 = sbr.rel (0) target = $region33
    $region32: #{tpu_custom_call.1} parent=1 // pred_region
      %59 = dma.done [#allocation6], 256
    $region33: #{tpu_custom_call.1} parent=1 // pred_fallthru
      _
    %v60 = vld [vmem:[#allocation2] sm:$0xff]
    %v61 = vld [vmem:[#allocation5] sm:$0xff]
    %v62 = vld [vmem:[#allocation5 + $0x8] sm:$0xff]
    %v63 = vld [vmem:[%s2] sm:$0x1]
    %v65 = vlaneseq
    %v66 = vshrl.u32 %v65, 7
    %v67 = vsub.s32 0, %v66
    %v68 = vrot.slane %v63, %v67
    %vm70 = vcmask 130048
    %v72 = vsel %vm70, %v60, 0
    %74 = vmatprep.subr.mxu0 0.0
    %75 = vmatpush1.msra.mxu0 %v61
    %76 = vmatprep.subr.mxu0 0.0
    %77 = vmatpush1.msra.mxu0 %v62
    %78 = vmatprep.subr.mxu0 0.0
    %79 = vmatpush1.msra.mxu0 0.0
    %80 = vmatprep.subr.mxu0 0.0
    %81 = vmatpush1.msra.mxu0 0.0
    %82 = vmatprep.subr.mxu0 0.0
    %83 = vmatpush1.msra.mxu0 0.0
    %84 = vmatprep.subr.mxu0 0.0
    %85 = vmatpush1.msra.mxu0 0.0
    %86 = vmatprep.subr.mxu0 0.0
    %87 = vmatpush1.msra.mxu0 0.0
    %88 = vmatprep.subr.mxu0 0.0
    %89 = vmatpush1.msra.mxu0 0.0
    %90 = vmatprep.subr.mxu0 0.0
    %91 = vmatpush1.msra.mxu0 0.0
    %92 = vmatprep.subr.mxu0 0.0
    %93 = vmatpush1.msra.mxu0 0.0
    %94 = vmatprep.subr.mxu0 0.0
    %95 = vmatpush1.msra.mxu0 0.0
    %96 = vmatprep.subr.mxu0 0.0
    %97 = vmatpush1.msra.mxu0 0.0
    %98 = vmatprep.subr.mxu0 0.0
    %99 = vmatpush1.msra.mxu0 0.0
    %100 = vmatprep.subr.mxu0 0.0
    %101 = vmatpush1.msra.mxu0 0.0
    %102 = vmatprep.subr.mxu0 0.0
    %103 = vmatpush1.msra.mxu0 0.0
    %104 = vmatprep.subr.mxu0 0.0
    %105 = vmatpush1.msra.mxu0 0.0
    %106 = vmatprep.subr.mxu0 0.0
    %107 = vmatpush1.msra.mxu0 0.0
    %108 = vmatprep.subr.mxu0 0.0
    %109 = vmatpush1.msra.mxu0 0.0
    %110 = vmatprep.subr.mxu0 0.0
    %111 = vmatpush1.msra.mxu0 0.0
    %112 = vmatprep.subr.mxu0 0.0
    %113 = vmatpush1.msra.mxu0 0.0
    %114 = vmatprep.subr.mxu0 0.0
    %115 = vmatpush1.msra.mxu0 0.0
    %116 = vmatprep.subr.mxu0 0.0
    %117 = vmatpush1.msra.mxu0 0.0
    %118 = vmatprep.subr.mxu0 0.0
    %119 = vmatpush1.msra.mxu0 0.0
    %120 = vmatprep.subr.mxu0 0.0
    %121 = vmatpush1.msra.mxu0 0.0
    %122 = vmatprep.subr.mxu0 0.0
    %123 = vmatpush1.msra.mxu0 0.0
    %124 = vmatprep.subr.mxu0 0.0
    %125 = vmatpush1.msra.mxu0 0.0
    %126 = vmatprep.subr.mxu0 0.0
    %127 = vmatpush1.msra.mxu0 0.0
    %128 = vmatprep.subr.mxu0 0.0
    %129 = vmatpush1.msra.mxu0 0.0
    %130 = vmatprep.subr.mxu0 0.0
    %131 = vmatpush1.msra.mxu0 0.0
    %132 = vmatprep.subr.mxu0 0.0
    %133 = vmatpush1.msra.mxu0 0.0
    %134 = vmatprep.subr.mxu0 0.0
    %135 = vmatpush1.msra.mxu0 0.0
    %136 = vmatprep.subr.mxu0 0.0
    %137 = vmatpush1.msra.mxu0 0.0
    %138 = vmatprep.mubr.f32.mxu0 0.0
    %139 = vmatmul.mubr.f32.gmra.mrb[0].mxu0 %v72
    %v140 = vpop.f32.mrb[0].mxu0
    %v141 = vadd.f32 %v68, %v140
    %v142 = vpop.f32.mrb[0].mxu0
    %143 = vdwg.mxu0
    %v144 = vld [vmem:[#allocation7] sm:$0xff]
    %v145 = vld [vmem:[#allocation7 + $0x8] sm:$0xff]
    %v146 = vld [vmem:[%s4] sm:$0x1]
    %v148 = vlaneseq
    %v149 = vshrl.u32 %v148, 7
    %v150 = vsub.s32 0, %v149
    %v151 = vrot.slane %v146, %v150
    %153 = vrot.lane.b32.xlu0 %v60, 112
    %v154 = vpop.permute.xlu0 %153
    %v155 = vsel %vm70, %v154, 0
    %157 = vmatprep.subr.mxu0 0.0
    %158 = vmatpush1.msra.mxu0 %v144
    %159 = vmatprep.subr.mxu0 0.0
    %160 = vmatpush1.msra.mxu0 %v145
    %161 = vmatprep.subr.mxu0 0.0
    %162 = vmatpush1.msra.mxu0 0.0
    %163 = vmatprep.subr.mxu0 0.0
    %164 = vmatpush1.msra.mxu0 0.0
    %165 = vmatprep.subr.mxu0 0.0
    %166 = vmatpush1.msra.mxu0 0.0
    %167 = vmatprep.subr.mxu0 0.0
    %168 = vmatpush1.msra.mxu0 0.0
    %169 = vmatprep.subr.mxu0 0.0
    %170 = vmatpush1.msra.mxu0 0.0
    %171 = vmatprep.subr.mxu0 0.0
    %172 = vmatpush1.msra.mxu0 0.0
    %173 = vmatprep.subr.mxu0 0.0
    %174 = vmatpush1.msra.mxu0 0.0
    %175 = vmatprep.subr.mxu0 0.0
    %176 = vmatpush1.msra.mxu0 0.0
    %177 = vmatprep.subr.mxu0 0.0
    %178 = vmatpush1.msra.mxu0 0.0
    %179 = vmatprep.subr.mxu0 0.0
    %180 = vmatpush1.msra.mxu0 0.0
    %181 = vmatprep.subr.mxu0 0.0
    %182 = vmatpush1.msra.mxu0 0.0
    %183 = vmatprep.subr.mxu0 0.0
    %184 = vmatpush1.msra.mxu0 0.0
    %185 = vmatprep.subr.mxu0 0.0
    %186 = vmatpush1.msra.mxu0 0.0
    %187 = vmatprep.subr.mxu0 0.0
    %188 = vmatpush1.msra.mxu0 0.0
    %189 = vmatprep.subr.mxu0 0.0
    %190 = vmatpush1.msra.mxu0 0.0
    %191 = vmatprep.subr.mxu0 0.0
    %192 = vmatpush1.msra.mxu0 0.0
    %193 = vmatprep.subr.mxu0 0.0
    %194 = vmatpush1.msra.mxu0 0.0
    %195 = vmatprep.subr.mxu0 0.0
    %196 = vmatpush1.msra.mxu0 0.0
    %197 = vmatprep.subr.mxu0 0.0
    %198 = vmatpush1.msra.mxu0 0.0
    %199 = vmatprep.subr.mxu0 0.0
    %200 = vmatpush1.msra.mxu0 0.0
    %201 = vmatprep.subr.mxu0 0.0
    %202 = vmatpush1.msra.mxu0 0.0
    %203 = vmatprep.subr.mxu0 0.0
    %204 = vmatpush1.msra.mxu0 0.0
    %205 = vmatprep.subr.mxu0 0.0
    %206 = vmatpush1.msra.mxu0 0.0
    %207 = vmatprep.subr.mxu0 0.0
    %208 = vmatpush1.msra.mxu0 0.0
    %209 = vmatprep.subr.mxu0 0.0
    %210 = vmatpush1.msra.mxu0 0.0
    %211 = vmatprep.subr.mxu0 0.0
    %212 = vmatpush1.msra.mxu0 0.0
    %213 = vmatprep.subr.mxu0 0.0
    %214 = vmatpush1.msra.mxu0 0.0
    %215 = vmatprep.subr.mxu0 0.0
    %216 = vmatpush1.msra.mxu0 0.0
    %217 = vmatprep.subr.mxu0 0.0
    %218 = vmatpush1.msra.mxu0 0.0
    %219 = vmatprep.subr.mxu0 0.0
    %220 = vmatpush1.msra.mxu0 0.0
    %221 = vmatprep.mubr.f32.mxu0 0.0
    %222 = vmatmul.mubr.f32.gmra.mrb[0].mxu0 %v155
    %v223 = vpop.f32.mrb[0].mxu0
    %v224 = vadd.f32 %v151, %v223
    %v225 = vpop.f32.mrb[0].mxu0
    %226 = vdwg.mxu0
    %228 = vrot.lane.b32.xlu0 %v224, 32
    %v229 = vpop.permute.xlu0 %228
    %vm231 = vcmask 261120
    %v232 = vsel %vm231, %v141, %v229
    %vm233 = vcmask 523264
    %234 = vst.msk [vmem:[#allocation8] sm:$0xff] %vm233, %v232
    // Predicated region
    $region34: #{tpu_custom_call.1} parent=1 // pred_check
      _
    $region35: #{tpu_custom_call.1} parent=1 // pred_check_branch
      %236 = sbr.rel (0) target = $region37
    $region36: #{tpu_custom_call.1} parent=1 // pred_region
      %s238 = ssub.s32 128, 128
      %239 = vsyncadd [#allocation4], %s238
      %s241 = sshll.u32 [#allocation8], 4
      %s242 = int_to_ptr.vmem [resolvable:$true] %s241
      %244 = dma.vmem_to_hbm [thread:$0]  %s242, 128, %s5, [#allocation4]
    $region37: #{tpu_custom_call.1} parent=1 // pred_fallthru
      _
    // Predicated region
    $region38: #{tpu_custom_call.1} parent=1 // pred_check
      _
    $region39: #{tpu_custom_call.1} parent=1 // pred_check_branch
      %246 = sbr.rel (0) target = $region41
    $region40: #{tpu_custom_call.1} parent=1 // pred_region
      %247 = dma.done [#allocation4], 128
    $region41: #{tpu_custom_call.1} parent=1 // pred_fallthru
      _
    %248 = vsyncpa [#allocation3], 1
    %249 = vsyncpa [#allocation6], 1
    %250 = vsyncpa [#allocation4], 1

</llo_original>
